<compile_context>
chip_gen: v7x
topology: tpu7x:2x2x1
jax: 0.10.0
libtpu: 0.0.40
codegen_flags: <defaults>
</compile_context>

<pallas_src>
import math
import functools
from functools import partial

import jax
import jax.numpy as jnp
from jax import lax
from jax.experimental import pallas as pl
from jax.experimental.pallas import tpu as pltpu

LN_EPS = 1e-12


# ----------------------------- per-chip tuning -------------------------------

@functools.lru_cache(maxsize=None)
def _tpu_tuning():
    """Per-generation tile targets / alignments / VMEM limits.

    v6e: break-even FLOP/byte ~650 -> big tiles; 256-wide MXU -> align 256.
    v7x: only 64 MiB physical VMEM and 2 TCs -> cap tm, explicit vmem limit.
    v5e: 128-wide MXU, already near compute-bound at tm~256-384; 16 MiB scoped
         default -> raise limit but keep tiles moderate.
    """
    kind = ""
    try:
        kind = jax.devices()[0].device_kind.lower()
    except Exception:
        pass
    if "v7" in kind:
        return dict(tm=512, tn=512, tk=768, align=256, hpb=256,
                    vmem=48 * 1024 * 1024)
    if "v5" in kind and ("lite" in kind or "v5e" in kind):
        return dict(tm=384, tn=512, tk=512, align=128, hpb=128,
                    vmem=64 * 1024 * 1024)
    if "v2" in kind or "v3" in kind or "v4" in kind or "v5" in kind:
        return dict(tm=512, tn=512, tk=512, align=128, hpb=256,
                    vmem=64 * 1024 * 1024)
    # v6e and default
    return dict(tm=768, tn=768, tk=768, align=256, hpb=256,
                vmem=96 * 1024 * 1024)


def _cparams(dim_sems):
    return pltpu.CompilerParams(dimension_semantics=dim_sems,
                                vmem_limit_bytes=_tpu_tuning()["vmem"])


def _pick_tile(dim, target, align):
    """Largest tile <= target that is a multiple of `align` and divides `dim`;
    falls back to the full dim (which always satisfies the (8,128) rule)."""
    if dim <= target:
        return dim
    t = (target // align) * align
    while t >= align:
        if dim % t == 0:
            return t
        t -= align
    return dim


# ----------------------------- Pallas kernels --------------------------------

def _gelu_f32(y):
    # erf-based GELU, matching pytorch-pretrained-bert's BertIntermediate.
    return 0.5 * y * (1.0 + lax.erf(y * (1.0 / math.sqrt(2.0))))


def _layernorm_kernel(x_ref, g_ref, b_ref, o_ref, *, eps):
    x = x_ref[...].astype(jnp.float32)
    mu = jnp.mean(x, axis=-1, keepdims=True)
    xc = x - mu
    var = jnp.mean(xc * xc, axis=-1, keepdims=True)
    o_ref[...] = (xc * lax.rsqrt(var + eps) * g_ref[...] + b_ref[...]).astype(o_ref.dtype)


def layernorm(x2d, gamma, beta, eps=LN_EPS, out_dtype=jnp.bfloat16, tm_target=1024):
    """Row-tiled LayerNorm over the last dim.  x2d: [M, H]."""
    M, H = x2d.shape
    tm = _pick_tile(M, tm_target, 16)    # 16-row sublane alignment for bf16
    g = gamma.reshape(1, H).astype(jnp.float32)
    b = beta.reshape(1, H).astype(jnp.float32)
    return pl.pallas_call(
        partial(_layernorm_kernel, eps=eps),
        grid=(M // tm,),
        in_specs=[pl.BlockSpec((tm, H), lambda i: (i, 0)),
                  pl.BlockSpec((1, H), lambda i: (0, 0)),
                  pl.BlockSpec((1, H), lambda i: (0, 0))],
        out_specs=pl.BlockSpec((tm, H), lambda i: (i, 0)),
        out_shape=jax.ShapeDtypeStruct((M, H), out_dtype),
        compiler_params=_cparams(("parallel",)),
    )(x2d, g, b)


def _dense_kernel(x_ref, w_ref, b_ref, o_ref, acc_ref, *, activation):
    @pl.when(pl.program_id(2) == 0)
    def _():
        acc_ref[...] = jnp.zeros_like(acc_ref)

    # bf16 x bf16 on the MXU, accumulate in f32.
    acc_ref[...] += jnp.dot(x_ref[...], w_ref[...], preferred_element_type=jnp.float32)

    @pl.when(pl.program_id(2) == pl.num_programs(2) - 1)
    def _():
        y = acc_ref[...] + b_ref[...]
        if activation == "gelu":
            y = _gelu_f32(y)
        o_ref[...] = y.astype(o_ref.dtype)


def dense(x2d, w, b, activation="none", out_dtype=None):
    """x2d[M,K] @ w[K,N] + b[N], optionally fused GELU; tiled + pipelined."""
    tune = _tpu_tuning()
    M, K = x2d.shape
    K2, N = w.shape
    assert K == K2
    out_dtype = out_dtype or x2d.dtype
    tm = _pick_tile(M, tune["tm"], 16)             # bf16 sublane packing
    tn = _pick_tile(N, tune["tn"], tune["align"])  # full MXU passes (256 on v6e/v7x)
    tk = _pick_tile(K, tune["tk"], tune["align"])
    bias = b.reshape(1, N).astype(jnp.float32)
    return pl.pallas_call(
        partial(_dense_kernel, activation=activation),
        grid=(M // tm, N // tn, K // tk),
        in_specs=[pl.BlockSpec((tm, tk), lambda i, j, k: (i, k)),
                  pl.BlockSpec((tk, tn), lambda i, j, k: (k, j)),
                  pl.BlockSpec((1, tn), lambda i, j, k: (0, j))],
        out_specs=pl.BlockSpec((tm, tn), lambda i, j, k: (i, j)),
        out_shape=jax.ShapeDtypeStruct((M, N), out_dtype),
        scratch_shapes=[pltpu.VMEM((tm, tn), jnp.float32)],
        compiler_params=_cparams(("parallel", "parallel", "arbitrary")),
    )(x2d, w, bias)


def _dense_add_ln_kernel(x_ref, w_ref, b_ref, r_ref, g_ref, bt_ref, o_ref, acc_ref, *, eps):
    @pl.when(pl.program_id(1) == 0)
    def _():
        acc_ref[...] = jnp.zeros_like(acc_ref)

    acc_ref[...] += jnp.dot(x_ref[...], w_ref[...], preferred_element_type=jnp.float32)

    @pl.when(pl.program_id(1) == pl.num_programs(1) - 1)
    def _():
        y = acc_ref[...] + b_ref[...] + r_ref[...].astype(jnp.float32)
        mu = jnp.mean(y, axis=-1, keepdims=True)
        yc = y - mu
        var = jnp.mean(yc * yc, axis=-1, keepdims=True)
        o_ref[...] = (yc * lax.rsqrt(var + eps) * g_ref[...] + bt_ref[...]).astype(o_ref.dtype)


def dense_add_layernorm(x2d, w, b, res2d, gamma, beta, eps=LN_EPS):
    """LayerNorm(x2d @ w + b + residual) fused into one kernel.  N is the full
    hidden dim (needed for the LN row statistics)."""
    tune = _tpu_tuning()
    M, K = x2d.shape
    K2, N = w.shape
    assert K == K2 and res2d.shape == (M, N)
    tm = _pick_tile(M, tune["tm"], 16)
    tk = _pick_tile(K, tune["tk"], tune["align"])
    return pl.pallas_call(
        partial(_dense_add_ln_kernel, eps=eps),
        grid=(M // tm, K // tk),
        in_specs=[pl.BlockSpec((tm, tk), lambda i, k: (i, k)),
                  pl.BlockSpec((tk, N), lambda i, k: (k, 0)),
                  pl.BlockSpec((1, N), lambda i, k: (0, 0)),
                  pl.BlockSpec((tm, N), lambda i, k: (i, 0)),
                  pl.BlockSpec((1, N), lambda i, k: (0, 0)),
                  pl.BlockSpec((1, N), lambda i, k: (0, 0))],
        out_specs=pl.BlockSpec((tm, N), lambda i, k: (i, 0)),
        out_shape=jax.ShapeDtypeStruct((M, N), res2d.dtype),
        scratch_shapes=[pltpu.VMEM((tm, N), jnp.float32)],
        compiler_params=_cparams(("parallel", "arbitrary")),
    )(x2d, w, b.reshape(1, N).astype(jnp.float32), res2d,
      gamma.reshape(1, N).astype(jnp.float32), beta.reshape(1, N).astype(jnp.float32))


def _attn_block_compute(q2d, k2d, v2d, bias_row, n_heads, head_dim, out_dtype):
    """q2d: (Tq, n_heads*Dh); k2d/v2d: (S, n_heads*Dh); bias_row: (1, S) f32.
    1/sqrt(Dh) is already folded into the Q projection weights."""
    outs = []
    for h in range(n_heads):
        lo = h * head_dim
        qh = q2d[:, lo:lo + head_dim]
        kh = k2d[:, lo:lo + head_dim]
        vh = v2d[:, lo:lo + head_dim]
        s = jnp.einsum("qd,kd->qk", qh, kh, preferred_element_type=jnp.float32)
        s = s + bias_row                                        # additive key mask
        m = jnp.max(s, axis=-1, keepdims=True)
        p = jnp.exp(s - m)
        denom = jnp.sum(p, axis=-1, keepdims=True)
        ctx = jnp.einsum("qk,kd->qd", p.astype(vh.dtype), vh,
                         preferred_element_type=jnp.float32)
        # Normalize the (Tq, Dh) context instead of the (Tq, S) probs:
        # ~S/Dh x fewer VALU multiplies; reciprocal stays on the EUP slot.
        outs.append(ctx * pl.reciprocal(denom, approx=True))
    return jnp.concatenate(outs, axis=-1).astype(out_dtype)      # (Tq, n_heads*Dh)


def _attention_sliced_kernel(q_ref, k_ref, v_ref, bias_ref, o_ref, *, hpb, head_dim):
    o_ref[0] = _attn_block_compute(q_ref[0], k_ref[0], v_ref[0], bias_ref[0, 0],
                                   hpb, head_dim, o_ref.dtype)


def _attention_fused_kernel(qkv_ref, bias_ref, o_ref, *, num_heads, head_dim):
    H = num_heads * head_dim
    qkv = qkv_ref[0]                                             # (S, 3H)
    o_ref[0] = _attn_block_compute(qkv[:, :H], qkv[:, H:2 * H], qkv[:, 2 * H:],
                                   bias_ref[0, 0], num_heads, head_dim, o_ref.dtype)


def mha_attention(qkv3d, mask_bias, num_heads, head_dim, tq_target=256):
    """qkv3d: [B, S, 3H] fused QKV projection output; mask_bias: [B,1,1,S] additive.

    Reads Q/K/V directly via column-sliced BlockSpecs (no HBM head transposes)
    and writes the context as lane-dense (S, heads*Dh) column blocks of [B,S,H].
    """
    tune = _tpu_tuning()
    B, S, threeH = qkv3d.shape
    H = num_heads * head_dim
    assert threeH == 3 * H
    out_shape = jax.ShapeDtypeStruct((B, S, H), qkv3d.dtype)

    # largest head group whose column width is a multiple of 128 (lane-aligned
    # slices into the [B,S,3H] array) and <= the per-chip target.
    hpb = 0
    for cand in range(num_heads, 0, -1):
        gw = cand * head_dim
        if num_heads % cand == 0 and gw % 128 == 0 and gw <= max(tune["hpb"], head_dim):
            hpb = cand
            break

    if hpb == 0:
        # Tiny-model fallback (demo shapes): one full-width QKV block per batch row.
        return pl.pallas_call(
            partial(_attention_fused_kernel, num_heads=num_heads, head_dim=head_dim),
            grid=(B,),
            in_specs=[pl.BlockSpec((1, S, 3 * H), lambda b: (b, 0, 0)),
                      pl.BlockSpec((1, 1, 1, S), lambda b: (b, 0, 0, 0))],
            out_specs=pl.BlockSpec((1, S, H), lambda b: (b, 0, 0)),
            out_shape=out_shape,
            compiler_params=_cparams(("parallel",)),
        )(qkv3d, mask_bias)

    ng = num_heads // hpb
    GW = hpb * head_dim
    tq = _pick_tile(S, tq_target, 16)    # query tiling bounds score temporaries
    # TODO(synk): add flash-style KV tiling (online softmax) for S >~ 1024.
    return pl.pallas_call(
        partial(_attention_sliced_kernel, hpb=hpb, head_dim=head_dim),
        grid=(B, ng, S // tq),
        in_specs=[pl.BlockSpec((1, tq, GW), lambda b, g, t: (b, t, g)),           # Q cols
                  pl.BlockSpec((1, S, GW), lambda b, g, t: (b, 0, ng + g)),       # K cols
                  pl.BlockSpec((1, S, GW), lambda b, g, t: (b, 0, 2 * ng + g)),   # V cols
                  pl.BlockSpec((1, 1, 1, S), lambda b, g, t: (b, 0, 0, 0))],
        out_specs=pl.BlockSpec((1, tq, GW), lambda b, g, t: (b, t, g)),
        out_shape=out_shape,
        compiler_params=_cparams(("parallel", "parallel", "parallel")),
    )(qkv3d, qkv3d, qkv3d, mask_bias)


# ----------------------------- parameters (synthetic) ------------------------

def init_bert_params(key, cfg):
    H, I = cfg["hidden"], cfg["intermediate"]
    Dh = H // cfg["num_heads"]
    attn_scale = 1.0 / math.sqrt(Dh)

    def nrm(k, shape, scale=0.02):
        return scale * jax.random.normal(k, shape, dtype=jnp.float32)

    keys = jax.random.split(key, 4 + 4 * cfg["num_layers"])
    params = {
        # embedding tables stored in bf16: halves gather traffic; LN math is f32.
        "word_emb": nrm(keys[0], (cfg["vocab"], H)).astype(jnp.bfloat16),
        "pos_emb":  nrm(keys[1], (cfg["max_pos"], H)).astype(jnp.bfloat16),
        "type_emb": nrm(keys[2], (cfg["type_vocab"], H)).astype(jnp.bfloat16),
        "emb_ln_g": jnp.ones((H,), jnp.float32),
        "emb_ln_b": jnp.zeros((H,), jnp.float32),
        "layers": [],
        # scalar-mix params (only used when embeddings_mode == 'mix')
        "mix_scalars": jnp.zeros((cfg["num_layers"] + 1,), jnp.float32),
        "mix_gamma": jnp.array(1.0, jnp.float32),
    }
    ki = 4
    for _ in range(cfg["num_layers"]):
        wqkv = nrm(keys[ki + 0], (H, 3 * H))
        # Fold the 1/sqrt(Dh) attention scale into the Q projection columns:
        # zero runtime cost vs. scaling the (S,S) score matrix in the kernel.
        wqkv = wqkv.at[:, :H].multiply(attn_scale)
        bqkv = jnp.zeros((3 * H,), jnp.float32).at[:H].multiply(attn_scale)
        params["layers"].append({
            "wqkv": wqkv.astype(jnp.bfloat16), "bqkv": bqkv,
            "wo": nrm(keys[ki + 1], (H, H)).astype(jnp.bfloat16),
            "bo": jnp.zeros((H,), jnp.float32),
            "attn_ln_g": jnp.ones((H,), jnp.float32),
            "attn_ln_b": jnp.zeros((H,), jnp.float32),
            "w1": nrm(keys[ki + 2], (H, I)).astype(jnp.bfloat16),
            "b1": jnp.zeros((I,), jnp.float32),
            "w2": nrm(keys[ki + 3], (I, H)).astype(jnp.bfloat16),
            "b2": jnp.zeros((H,), jnp.float32),
            "ffn_ln_g": jnp.ones((H,), jnp.float32),
            "ffn_ln_b": jnp.zeros((H,), jnp.float32),
        })
        ki += 4
    return params


# ----------------------------- BERT model (orchestration) --------------------

def bert_model(params, cfg, ids, token_type_ids, attention_mask):
    """Returns list of per-layer hidden states [B,S,H] (output_all_encoded_layers=True).
    Dropout omitted (eval mode); pooler output is unused upstream and skipped."""
    B, S = ids.shape
    H = cfg["hidden"]
    nH = cfg["num_heads"]
    Dh = H // nH

    # BertEmbeddings: gathers + adds are bf16 glue; LayerNorm runs in Pallas.
    emb = (jnp.take(params["word_emb"], ids, axis=0)
           + params["pos_emb"][None, :S, :]
           + jnp.take(params["type_emb"], token_type_ids, axis=0)).astype(jnp.bfloat16)
    x = layernorm(emb.reshape(B * S, H), params["emb_ln_g"], params["emb_ln_b"])  # bf16 [M,H]

    # extended additive attention mask, exactly as BertModel does
    mask_bias = ((1.0 - attention_mask.astype(jnp.float32)) * -10000.0).reshape(B, 1, 1, S)

    encoded = []
    for lp in params["layers"]:
        # --- self-attention: fused QKV projection (1/sqrt(Dh) pre-folded) ---
        qkv = dense(x, lp["wqkv"], lp["bqkv"])                     # [M, 3H] bf16
        ctx = mha_attention(qkv.reshape(B, S, 3 * H), mask_bias, nH, Dh)  # [B,S,H]
        # fused: out-projection + residual + LayerNorm
        x = dense_add_layernorm(ctx.reshape(B * S, H), lp["wo"], lp["bo"], x,
                                lp["attn_ln_g"], lp["attn_ln_b"])
        # --- feed-forward: GELU fused into the up-projection, residual+LN into the down ---
        h1 = dense(x, lp["w1"], lp["b1"], activation="gelu")
        x = dense_add_layernorm(h1, lp["w2"], lp["b2"], x,
                                lp["ffn_ln_g"], lp["ffn_ln_b"])
        encoded.append(x.reshape(B, S, H))
    return encoded


def _get_seg_ids(ids, sep_id):
    """JAX equivalent of the PyTorch helper (glue): segment 0 up to and including
    the first [SEP] of each row, segment 1 afterwards.
    TODO(synk): rows without any [SEP] get segment 1 for every position > 0,
    which differs from the PyTorch helper's (already ill-defined) behavior."""
    is_sep = (ids == sep_id)
    first_sep = jnp.argmax(is_sep, axis=1)
    pos = jnp.arange(ids.shape[1], dtype=ids.dtype)[None, :]
    return (pos > first_sep[:, None]).astype(ids.dtype)


def bert_embedder_forward(params, cfg, sent, unused_task_name="", is_pair_task=False,
                          embeddings_mode="cat", sep_id=5, pad_id=0):
    """Mirrors BertEmbedderModule.forward.  Returns [batch, seq, d_emb]."""
    assert "bert_wpm_pretokenized" in sent
    ids = sent["bert_wpm_pretokenized"].astype(jnp.int32)
    assert ids.shape[1] <= 512
    mask = (ids != 0)
    ids = jnp.where(ids == 0, pad_id + 2, ids)
    # NOTE: the original `assert (ids > 1).all()` would force a host sync / break
    # under jit; the precondition (all non-pad ids >= 2) is documented instead.
    ids = ids - 2

    B, S = ids.shape
    H = cfg["hidden"]

    h_lex = None
    if embeddings_mode not in ("none", "top"):
        we = jnp.take(params["word_emb"], ids, axis=0)               # gather = glue
        h_lex = layernorm(we.reshape(B * S, H),
                          params["emb_ln_g"], params["emb_ln_b"]).reshape(B, S, H)

    h_enc = None
    encoded_layers = None
    if embeddings_mode != "only":
        token_types = _get_seg_ids(ids, sep_id) if is_pair_task else jnp.zeros_like(ids)
        encoded_layers = bert_model(params, cfg, ids, token_types, mask)
        h_enc = encoded_layers[-1]

    if embeddings_mode in ("none", "top"):
        h = h_enc
    elif embeddings_mode == "only":
        h = h_lex
    elif embeddings_mode == "cat":
        h = jnp.concatenate([h_enc, h_lex], axis=2)
    elif embeddings_mode == "mix":
        # ScalarMix(do_layer_norm=False): incremental weighted accumulation,
        # no [L+1,B,S,H] stacked temporary in HBM.
        w = jax.nn.softmax(params["mix_scalars"])
        acc = w[0] * h_lex.astype(jnp.float32)
        for i, layer in enumerate(encoded_layers):
            acc = acc + w[i + 1] * layer.astype(jnp.float32)
        h = (params["mix_gamma"] * acc).astype(h_enc.dtype)
    else:
        raise NotImplementedError(f"embeddings_mode={embeddings_mode} not supported.")
    return h


# ----------------------------------- demo ------------------------------------

if __name__ == "__main__":
    cfg = dict(vocab=64, hidden=32, num_layers=2, num_heads=4,
               intermediate=64, max_pos=16, type_vocab=2)
    B, S = 2, 8

    key = jax.random.PRNGKey(0)
    pkey, ikey = jax.random.split(key)
    params = init_bert_params(pkey, cfg)

    # token ids in [2, vocab+1] so the "-2" shift maps into the vocab;
    # zeros mark padding, exactly as the original module expects.
    ids = jax.random.randint(ikey, (B, S), 2, cfg["vocab"] + 2, dtype=jnp.int32)
    ids = ids.at[1, S - 2:].set(0)   # some padding in the last row

    sent = {"bert_wpm_pretokenized": ids}
    h = bert_embedder_forward(params, cfg, sent, is_pair_task=False,
                              embeddings_mode="cat")
    jax.block_until_ready(h)
    assert h.shape == (B, S, 2 * cfg["hidden"])   # 'cat' -> 2 * hidden_size
    print("KERNEL_OK")
</pallas_src>

<mosaic_0001>
module attributes {stable_mosaic.version = 11 : i64} {
  func.func @_layernorm_kernel(%arg0: i32, %arg1: memref<16x32xbf16, #tpu.memory_space<vmem>>, %arg2: memref<1x32xf32, #tpu.memory_space<vmem>>, %arg3: memref<1x32xf32, #tpu.memory_space<vmem>>, %arg4: memref<16x32xbf16, #tpu.memory_space<vmem>>) attributes {dimension_semantics = [#tpu.dimension_semantics<parallel>], iteration_bounds = array<i64: 1>, scalar_prefetch = 0 : i64, scratch_operands = 0 : i64, tpu.core_type = #tpu.core_type<tc>, window_params = [{transform_indices = @transform_0, window_bounds = array<i64: 16, 32>}, {pipeline_mode = #tpu.pipeline_mode<synchronous>, transform_indices = @transform_1, window_bounds = array<i64: 1, 32>}, {pipeline_mode = #tpu.pipeline_mode<synchronous>, transform_indices = @transform_2, window_bounds = array<i64: 1, 32>}, {transform_indices = @transform_3, window_bounds = array<i64: 16, 32>}]} {
    %c0 = arith.constant 0 : index
    %c0_0 = arith.constant 0 : index
    %0 = vector.load %arg1[%c0, %c0_0] : memref<16x32xbf16, #tpu.memory_space<vmem>>, vector<16x32xbf16>
    %1 = arith.extf %0 : vector<16x32xbf16> to vector<16x32xf32>
    %cst = arith.constant dense<0.000000e+00> : vector<16xf32>
    %2 = vector.multi_reduction <add>, %1, %cst [1] : vector<16x32xf32> to vector<16xf32>
    %3 = vector.shape_cast %2 : vector<16xf32> to vector<16x1xf32>
    %cst_1 = arith.constant 3.200000e+01 : f32
    %4 = vector.broadcast %cst_1 : f32 to vector<16x1xf32>
    %5 = arith.divf %3, %4 : vector<16x1xf32>
    %6 = vector.broadcast %5 : vector<16x1xf32> to vector<16x32xf32>
    %7 = arith.subf %1, %6 : vector<16x32xf32>
    %8 = arith.mulf %7, %7 : vector<16x32xf32>
    %cst_2 = arith.constant dense<0.000000e+00> : vector<16xf32>
    %9 = vector.multi_reduction <add>, %8, %cst_2 [1] : vector<16x32xf32> to vector<16xf32>
    %10 = vector.shape_cast %9 : vector<16xf32> to vector<16x1xf32>
    %cst_3 = arith.constant 3.200000e+01 : f32
    %11 = vector.broadcast %cst_3 : f32 to vector<16x1xf32>
    %12 = arith.divf %10, %11 : vector<16x1xf32>
    %cst_4 = arith.constant 9.99999996E-13 : f32
    %13 = vector.broadcast %cst_4 : f32 to vector<16x1xf32>
    %14 = arith.addf %12, %13 : vector<16x1xf32>
    %15 = math.rsqrt %14 : vector<16x1xf32>
    %16 = vector.broadcast %15 : vector<16x1xf32> to vector<16x32xf32>
    %17 = arith.mulf %7, %16 : vector<16x32xf32>
    %c0_5 = arith.constant 0 : index
    %c0_6 = arith.constant 0 : index
    %18 = vector.load %arg2[%c0_5, %c0_6] : memref<1x32xf32, #tpu.memory_space<vmem>>, vector<1x32xf32>
    %19 = vector.broadcast %18 : vector<1x32xf32> to vector<16x32xf32>
    %20 = arith.mulf %17, %19 : vector<16x32xf32>
    %c0_7 = arith.constant 0 : index
    %c0_8 = arith.constant 0 : index
    %21 = vector.load %arg3[%c0_7, %c0_8] : memref<1x32xf32, #tpu.memory_space<vmem>>, vector<1x32xf32>
    %22 = vector.broadcast %21 : vector<1x32xf32> to vector<16x32xf32>
    %23 = arith.addf %20, %22 : vector<16x32xf32>
    %24 = arith.truncf %23 : vector<16x32xf32> to vector<16x32xbf16>
    %c0_9 = arith.constant 0 : index
    %c0_10 = arith.constant 0 : index
    %25 = vector.load %arg4[%c0_9, %c0_10] : memref<16x32xbf16, #tpu.memory_space<vmem>>, vector<16x32xbf16>
    tpu.vector_store %arg4[%c0_9, %c0_10], %24 {strides = array<i32>} : memref<16x32xbf16, #tpu.memory_space<vmem>>, vector<16x32xbf16>,
    return
  }
  func.func @transform_0(%arg0: i32) -> (i32, i32) {
    %c0_i32 = arith.constant 0 : i32
    %c0_i32_0 = arith.constant 0 : i32
    return %arg0, %c0_i32 : i32, i32
  }
  func.func @transform_1(%arg0: i32) -> (i32, i32) {
    %c0_i32 = arith.constant 0 : i32
    %c0_i32_0 = arith.constant 0 : i32
    %c0_i32_1 = arith.constant 0 : i32
    return %c0_i32, %c0_i32_0 : i32, i32
  }
  func.func @transform_2(%arg0: i32) -> (i32, i32) {
    %c0_i32 = arith.constant 0 : i32
    %c0_i32_0 = arith.constant 0 : i32
    %c0_i32_1 = arith.constant 0 : i32
    return %c0_i32, %c0_i32_0 : i32, i32
  }
  func.func @transform_3(%arg0: i32) -> (i32, i32) {
    %c0_i32 = arith.constant 0 : i32
    %c0_i32_0 = arith.constant 0 : i32
    return %arg0, %c0_i32 : i32, i32
  }
}

</mosaic_0001>

<llo_original>
// kernel: tpu_custom_call.1
$region0: #{tpu_custom_call.1}
  #allocation0 [shape = 'u32[]', space=smem, size = 0x4, offset = 0x4, fixed_abs, tag = 'smem constant byte address 0x4 - core index']
  #allocation1 [shape = 'u32[144,128]{1,0:T(1,128)}', space=vmem, size = 0x12000, scoped, tag = 'internal scratch']
  %s0 = inlined_call_operand.hbm [shape: bf16[16,32], index: 0, kind: input, shape index: {}]
  %s1 = inlined_call_operand.hbm [shape: f32[1,32], index: 1, kind: input, shape index: {}]
  %s2 = inlined_call_operand.hbm [shape: f32[1,32], index: 2, kind: input, shape index: {}]
  %s3 = inlined_call_operand.hbm [shape: bf16[16,32], index: 3, kind: output, shape index: {}]
  %s4 = sld [smem:[#allocation0]]
  $region34: #{tpu_custom_call.1} parent=0
    _
  %s6 = ssub.s32 1, %s4
  %s7 = scalar_select 0, %s6, %s4
  $region1: #{tpu_custom_call.1} parent=0
    #allocation2 [shape = 'u8[4096]{0}', space=vmem, size = 0x1000, scoped, tag = 'input window, operand 0, single buffered']
    #allocation3 [shape = 's32[1]{0}', space=sflag, size = 0x4, scoped, tag = 'scoped memory for tpu_custom_call.1']
    #allocation4 [shape = 's32[1]{0}', space=sflag, size = 0x4, scoped, tag = 'scoped memory for tpu_custom_call.1']
    #allocation5 [shape = 'u8[512]{0}', space=vmem, size = 0x400, scoped, tag = 'input window, operand 1, single buffered']
    #allocation6 [shape = 's32[1]{0}', space=sflag, size = 0x4, scoped, tag = 'scoped memory for tpu_custom_call.1']
    #allocation7 [shape = 'u8[512]{0}', space=vmem, size = 0x400, scoped, tag = 'input window, operand 2, single buffered']
    #allocation8 [shape = 'u8[4096]{0}', space=vmem, size = 0x1000, scoped, tag = 'output window, operand 0, single buffered']
    %8 = vsyncpa [#allocation3], 0
    %9 = vsyncpa [#allocation6], 0
    %10 = vsyncpa [#allocation4], 0
    // Predicated region
    $region2: #{tpu_custom_call.1} parent=1 // pred_check
      _
    $region3: #{tpu_custom_call.1} parent=1 // pred_check_branch
      %12 = sbr.rel (0) target = $region5
    $region4: #{tpu_custom_call.1} parent=1 // pred_region
      %s14 = ssub.s32 128, 128
      %15 = vsyncadd [#allocation3], %s14
      %s16 = sshll.u32 [#allocation2], 4
      %s17 = int_to_ptr.vmem [resolvable:$true] %s16
      %22 = dma.hbm_to_vmem [thread:$0]  %s0, 128, %s17, [#allocation3], 64, 64, 4
    $region5: #{tpu_custom_call.1} parent=1 // pred_fallthru
      _
    // Predicated region
    $region6: #{tpu_custom_call.1} parent=1 // pred_check
      _
    $region7: #{tpu_custom_call.1} parent=1 // pred_check_branch
      %24 = sbr.rel (0) target = $region9
    $region8: #{tpu_custom_call.1} parent=1 // pred_region
      %s26 = ssub.s32 16, 16
      %27 = vsyncadd [#allocation6], %s26
      %s29 = sshll.u32 [#allocation5], 4
      %s30 = int_to_ptr.vmem [resolvable:$true] %s29
      %32 = dma.hbm_to_vmem [thread:$0]  %s1, 16, %s30, [#allocation6]
    $region9: #{tpu_custom_call.1} parent=1 // pred_fallthru
      _
    // Predicated region
    $region10: #{tpu_custom_call.1} parent=1 // pred_check
      _
    $region11: #{tpu_custom_call.1} parent=1 // pred_check_branch
      %34 = sbr.rel (0) target = $region13
    $region12: #{tpu_custom_call.1} parent=1 // pred_region
      %s36 = ssub.s32 16, 16
      %37 = vsyncadd [#allocation6], %s36
      %s39 = sshll.u32 [#allocation7], 4
      %s40 = int_to_ptr.vmem [resolvable:$true] %s39
      %42 = dma.hbm_to_vmem [thread:$0]  %s2, 16, %s40, [#allocation6]
    $region13: #{tpu_custom_call.1} parent=1 // pred_fallthru
      _
    // Predicated region
    $region14: #{tpu_custom_call.1} parent=1 // pred_check
      _
    $region15: #{tpu_custom_call.1} parent=1 // pred_check_branch
      %44 = sbr.rel (0) target = $region17
    $region16: #{tpu_custom_call.1} parent=1 // pred_region
      %45 = dma.done [#allocation3], 128
    $region17: #{tpu_custom_call.1} parent=1 // pred_fallthru
      _
    // Predicated region
    $region18: #{tpu_custom_call.1} parent=1 // pred_check
      _
    $region19: #{tpu_custom_call.1} parent=1 // pred_check_branch
      %47 = sbr.rel (0) target = $region21
    $region20: #{tpu_custom_call.1} parent=1 // pred_region
      %48 = dma.done [#allocation6], 16
    $region21: #{tpu_custom_call.1} parent=1 // pred_fallthru
      _
    // Predicated region
    $region22: #{tpu_custom_call.1} parent=1 // pred_check
      _
    $region23: #{tpu_custom_call.1} parent=1 // pred_check_branch
      %50 = sbr.rel (0) target = $region25
    $region24: #{tpu_custom_call.1} parent=1 // pred_region
      %51 = dma.done [#allocation6], 16
    $region25: #{tpu_custom_call.1} parent=1 // pred_fallthru
      _
    %v52 = vld [vmem:[#allocation2] sm:$0xf]
    %v53 = vld [vmem:[#allocation2 + $0x4] sm:$0xf]
    %v54 = vunpack.c.l.bf16 %v52
    %v55 = vunpack.c.l.bf16 %v53
    %vm56 = vcmask 261120
    %v57 = vsel %vm56, %v54, 0.0
    %58 = vadd.xlane.f32.xlu0 %v57
    %v59 = vpop.xlane.xlu0 %58
    %v60 = vsel %vm56, %v55, 0.0
    %61 = vadd.xlane.f32.xlu0 %v60
    %v62 = vpop.xlane.xlu0 %61
    %v63 = vrcp.pop 32.0
    %v64 = vmul.f32 %v59, %v63
    %v65 = vmul.f32 %v62, %v63
    %v66 = vsub.f32 %v54, %v64
    %v67 = vsub.f32 %v55, %v65
    %v68 = vmul.f32 %v66, %v66
    %v69 = vmul.f32 %v67, %v67
    %v70 = vsel %vm56, %v68, 0.0
    %71 = vadd.xlane.f32.xlu0 %v70
    %v72 = vpop.xlane.xlu0 %71
    %v73 = vsel %vm56, %v69, 0.0
    %74 = vadd.xlane.f32.xlu0 %v73
    %v75 = vpop.xlane.xlu0 %74
    %v76 = vmul.f32 %v72, %v63
    %v77 = vmul.f32 %v75, %v63
    %v78 = vadd.f32 %v76, 1e-12
    %v79 = vadd.f32 %v77, 1e-12
    %v80 = vrsqrt.pop %v78
    %v81 = vrsqrt.pop %v79
    %v82 = vmul.f32 %v66, %v80
    %v83 = vmul.f32 %v67, %v81
    %v84 = vld [vmem:[#allocation5] sm:$0x1]
    %v86 = vlaneseq
    %v87 = vshrl.u32 %v86, 7
    %v88 = vsub.s32 0, %v87
    %v89 = vrot.slane %v84, %v88
    %v91 = vmul.f32 %v82, %v89
    %v92 = vmul.f32 %v83, %v89
    %v93 = vld [vmem:[#allocation7] sm:$0x1]
    %v95 = vlaneseq
    %v96 = vshrl.u32 %v95, 7
    %v97 = vsub.s32 0, %v96
    %v98 = vrot.slane %v93, %v97
    %v100 = vadd.f32 %v91, %v98
    %v101 = vadd.f32 %v92, %v98
    %v102 = vpack.c.bf16 %v101, %v100
    %v104 = vunpack.c.l.b16 %v102
    %v105 = vunpack.c.h.b16 %v102
    %v106 = vpack.c.b16 %v104, %v104
    %v107 = vpack.c.b16 %v105, %v105
    %vm110 = vcmask 257024
    %111 = vst.msk [vmem:[#allocation8] sm:$0xf] %vm110, %v106
    %112 = vst.msk [vmem:[#allocation8 + $0x4] sm:$0xf] %vm110, %v107
    // Predicated region
    $region26: #{tpu_custom_call.1} parent=1 // pred_check
      _
    $region27: #{tpu_custom_call.1} parent=1 // pred_check_branch
      %114 = sbr.rel (0) target = $region29
    $region28: #{tpu_custom_call.1} parent=1 // pred_region
      %s116 = ssub.s32 128, 128
      %117 = vsyncadd [#allocation4], %s116
      %s118 = sshll.u32 [#allocation8], 4
      %s119 = int_to_ptr.vmem [resolvable:$true] %s118
      %124 = dma.vmem_to_hbm [thread:$0]  %s119, 128, %s3, [#allocation4], 64, 64, 4
    $region29: #{tpu_custom_call.1} parent=1 // pred_fallthru
      _
    // Predicated region
    $region30: #{tpu_custom_call.1} parent=1 // pred_check
      _
    $region31: #{tpu_custom_call.1} parent=1 // pred_check_branch
      %126 = sbr.rel (0) target = $region33
    $region32: #{tpu_custom_call.1} parent=1 // pred_region
      %127 = dma.done [#allocation4], 128
    $region33: #{tpu_custom_call.1} parent=1 // pred_fallthru
      _
    %128 = vsyncpa [#allocation3], 1
    %129 = vsyncpa [#allocation6], 1
    %130 = vsyncpa [#allocation4], 1

</llo_original>
